<compile_context>
chip_gen: v5e
topology: v5e:2x2
jax: 0.10.0
libtpu: 0.0.40
codegen_flags: <defaults>
</compile_context>

<pallas_src>
import jax
import jax.numpy as jnp
from jax.experimental import pallas as pl
from jax.experimental.pallas import tpu as pltpu

OUT_PAD = 128  # lane-dense padded width for the 2-wide output projection


def custom_head_kernel(x_ref, w1_ref, b1_ref, w2_ref, b2_ref, o_ref):
    """Fused: (sum-folded) Linear(S*F->H) -> tanh -> Linear(H->OUT_PAD).

    x_ref : (TN, S*F)   flattened word-subword embeddings tile
    w1_ref: (S*F, H)    w1 tiled S times along the contraction axis
    b1_ref: (1, H)
    w2_ref: (H, OUT_PAD)  zero-padded beyond column 2
    b2_ref: (1, OUT_PAD)  zero-padded beyond column 2
    o_ref : (TN, OUT_PAD)
    """
    h = jnp.tanh(
        jnp.dot(x_ref[...], w1_ref[...], preferred_element_type=jnp.float32)
        + b1_ref[...]
    )  # (TN, H), f32
    o_ref[...] = (
        jnp.dot(h, w2_ref[...], preferred_element_type=jnp.float32)
        + b2_ref[...]
    ).astype(o_ref.dtype)


def custom_head(x, w1, b1, w2, b2, *, tile_rows=512):
    """x: [B, W, S, F]  ->  returns [B, 2, W]  (matches PyTorch permute(0,2,1))."""
    B, W, S, F = x.shape
    H = w1.shape[1]
    N = B * W
    SF = S * F

    # Fold the subword sum into the first matmul (exactly equivalent in f32).
    x2d = x.reshape(N, SF)
    w1_tiled = jnp.tile(w1, (S, 1))                      # (S*F, H)
    b1r = b1.reshape(1, H)

    # Lane-dense padded output projection.
    w2_pad = jnp.zeros((H, OUT_PAD), w2.dtype).at[:, :2].set(w2)
    b2_pad = jnp.zeros((1, OUT_PAD), b2.dtype).at[:, :2].set(b2.reshape(1, 2))

    # Row-tile size: multiple of 8, capped at tile_rows (v7x-safe VMEM budget).
    TN = min(tile_rows, ((N + 7) // 8) * 8)
    TN = max(8, ((TN + 7) // 8) * 8)
    n_tiles = -(-N // TN)
    N_pad = n_tiles * TN
    if N_pad != N:
        x2d = jnp.pad(x2d, ((0, N_pad - N), (0, 0)))     # zero rows -> harmless, sliced off

    cost = pl.CostEstimate(
        flops=2 * N_pad * SF * H + 2 * N_pad * H * OUT_PAD,
        transcendentals=N_pad * H,
        bytes_accessed=4 * (N_pad * SF + N_pad * OUT_PAD + SF * H + H * OUT_PAD + H + OUT_PAD),
    )

    out = pl.pallas_call(
        custom_head_kernel,
        out_shape=jax.ShapeDtypeStruct((N_pad, OUT_PAD), jnp.float32),
        grid=(n_tiles,),
        in_specs=[
            pl.BlockSpec((TN, SF), lambda i: (i, 0)),
            pl.BlockSpec((SF, H), lambda i: (0, 0)),
            pl.BlockSpec((1, H), lambda i: (0, 0)),
            pl.BlockSpec((H, OUT_PAD), lambda i: (0, 0)),
            pl.BlockSpec((1, OUT_PAD), lambda i: (0, 0)),
        ],
        out_specs=pl.BlockSpec((TN, OUT_PAD), lambda i: (i, 0)),
        compiler_params=pltpu.CompilerParams(
            dimension_semantics=("parallel",),
        ),
        cost_estimate=cost,
    )(x2d, w1_tiled, b1r, w2_pad, b2_pad)

    out = out[:N, :2].reshape(B, W, 2)
    return jnp.transpose(out, (0, 2, 1))                 # [B, 2, W]


def reference(x, w1, b1, w2, b2):
    """Pure-JAX reference of the PyTorch forward (eval mode)."""
    word = jnp.sum(x, axis=2)                            # [B, W, F]
    h = jnp.tanh(word @ w1 + b1)                         # [B, W, H]
    out = h @ w2 + b2                                    # [B, W, 2]
    return jnp.transpose(out, (0, 2, 1))                 # [B, 2, W]


if __name__ == "__main__":
    # Small shapes consistent with the forward pass.
    B, W, S = 2, 8, 4          # batch, words, max_subw_per_word
    F, H = 32, 32              # feature_dim, hidden_size

    key = jax.random.PRNGKey(0)
    kx, kw1, kb1, kw2, kb2 = jax.random.split(key, 5)

    x = jax.random.normal(kx, (B, W, S, F), dtype=jnp.float32)
    # Deterministic synthetic parameters (shapes from nn.Linear defs).
    w1 = jax.random.normal(kw1, (F, H), dtype=jnp.float32) * 0.05
    b1 = jax.random.normal(kb1, (H,), dtype=jnp.float32) * 0.05
    w2 = jax.random.normal(kw2, (H, 2), dtype=jnp.float32) * 0.05
    b2 = jax.random.normal(kb2, (2,), dtype=jnp.float32) * 0.05

    y = custom_head(x, w1, b1, w2, b2)
    y = jax.block_until_ready(y)

    y_ref = reference(x, w1, b1, w2, b2)
    assert y.shape == (B, 2, W), y.shape
    assert jnp.allclose(y, y_ref, atol=1e-5, rtol=1e-5), "mismatch vs reference"

    print("KERNEL_OK")
</pallas_src>

<mosaic_0001>
module attributes {stable_mosaic.version = 11 : i64} {
  func.func @custom_head_kernel(%arg0: i32, %arg1: memref<16x128xf32, #tpu.memory_space<vmem>>, %arg2: memref<128x32xf32, #tpu.memory_space<vmem>>, %arg3: memref<1x32xf32, #tpu.memory_space<vmem>>, %arg4: memref<32x128xf32, #tpu.memory_space<vmem>>, %arg5: memref<1x128xf32, #tpu.memory_space<vmem>>, %arg6: memref<16x128xf32, #tpu.memory_space<vmem>>) attributes {dimension_semantics = [#tpu.dimension_semantics<parallel>], iteration_bounds = array<i64: 1>, scalar_prefetch = 0 : i64, scratch_operands = 0 : i64, tpu.core_type = #tpu.core_type<tc>, window_params = [{transform_indices = @transform_0, window_bounds = array<i64: 16, 128>}, {pipeline_mode = #tpu.pipeline_mode<synchronous>, transform_indices = @transform_1, window_bounds = array<i64: 128, 32>}, {pipeline_mode = #tpu.pipeline_mode<synchronous>, transform_indices = @transform_2, window_bounds = array<i64: 1, 32>}, {pipeline_mode = #tpu.pipeline_mode<synchronous>, transform_indices = @transform_3, window_bounds = array<i64: 32, 128>}, {pipeline_mode = #tpu.pipeline_mode<synchronous>, transform_indices = @transform_4, window_bounds = array<i64: 1, 128>}, {transform_indices = @transform_5, window_bounds = array<i64: 16, 128>}]} {
    %c0 = arith.constant 0 : index
    %c0_0 = arith.constant 0 : index
    %0 = vector.load %arg1[%c0, %c0_0] : memref<16x128xf32, #tpu.memory_space<vmem>>, vector<16x128xf32>
    %c0_1 = arith.constant 0 : index
    %c0_2 = arith.constant 0 : index
    %1 = vector.load %arg2[%c0_1, %c0_2] : memref<128x32xf32, #tpu.memory_space<vmem>>, vector<128x32xf32>
    %cst = arith.constant dense<0.000000e+00> : vector<16x32xf32>
    %2 = tpu.matmul %0, %1, %cst {dimension_numbers = #tpu.dot_dimension_numbers<[1], [0], [0], [1], [0, 0, 1, 1], [], []>} : vector<16x128xf32>, vector<128x32xf32>, vector<16x32xf32> -> vector<16x32xf32>
    %c0_3 = arith.constant 0 : index
    %c0_4 = arith.constant 0 : index
    %3 = vector.load %arg3[%c0_3, %c0_4] : memref<1x32xf32, #tpu.memory_space<vmem>>, vector<1x32xf32>
    %4 = vector.broadcast %3 : vector<1x32xf32> to vector<16x32xf32>
    %5 = arith.addf %2, %4 : vector<16x32xf32>
    %6 = math.tanh %5 : vector<16x32xf32>
    %c0_5 = arith.constant 0 : index
    %c0_6 = arith.constant 0 : index
    %7 = vector.load %arg4[%c0_5, %c0_6] : memref<32x128xf32, #tpu.memory_space<vmem>>, vector<32x128xf32>
    %cst_7 = arith.constant dense<0.000000e+00> : vector<16x128xf32>
    %8 = tpu.matmul %6, %7, %cst_7 {dimension_numbers = #tpu.dot_dimension_numbers<[1], [0], [0], [1], [0, 0, 1, 1], [], []>} : vector<16x32xf32>, vector<32x128xf32>, vector<16x128xf32> -> vector<16x128xf32>
    %c0_8 = arith.constant 0 : index
    %c0_9 = arith.constant 0 : index
    %9 = vector.load %arg5[%c0_8, %c0_9] : memref<1x128xf32, #tpu.memory_space<vmem>>, vector<1x128xf32>
    %10 = vector.broadcast %9 : vector<1x128xf32> to vector<16x128xf32>
    %11 = arith.addf %8, %10 : vector<16x128xf32>
    %c0_10 = arith.constant 0 : index
    %c0_11 = arith.constant 0 : index
    %12 = vector.load %arg6[%c0_10, %c0_11] : memref<16x128xf32, #tpu.memory_space<vmem>>, vector<16x128xf32>
    tpu.vector_store %arg6[%c0_10, %c0_11], %11 {strides = array<i32>} : memref<16x128xf32, #tpu.memory_space<vmem>>, vector<16x128xf32>,
    return
  }
  func.func @transform_0(%arg0: i32) -> (i32, i32) {
    %c0_i32 = arith.constant 0 : i32
    %c0_i32_0 = arith.constant 0 : i32
    return %arg0, %c0_i32 : i32, i32
  }
  func.func @transform_1(%arg0: i32) -> (i32, i32) {
    %c0_i32 = arith.constant 0 : i32
    %c0_i32_0 = arith.constant 0 : i32
    %c0_i32_1 = arith.constant 0 : i32
    return %c0_i32, %c0_i32_0 : i32, i32
  }
  func.func @transform_2(%arg0: i32) -> (i32, i32) {
    %c0_i32 = arith.constant 0 : i32
    %c0_i32_0 = arith.constant 0 : i32
    %c0_i32_1 = arith.constant 0 : i32
    return %c0_i32, %c0_i32_0 : i32, i32
  }
  func.func @transform_3(%arg0: i32) -> (i32, i32) {
    %c0_i32 = arith.constant 0 : i32
    %c0_i32_0 = arith.constant 0 : i32
    %c0_i32_1 = arith.constant 0 : i32
    return %c0_i32, %c0_i32_0 : i32, i32
  }
  func.func @transform_4(%arg0: i32) -> (i32, i32) {
    %c0_i32 = arith.constant 0 : i32
    %c0_i32_0 = arith.constant 0 : i32
    %c0_i32_1 = arith.constant 0 : i32
    return %c0_i32, %c0_i32_0 : i32, i32
  }
  func.func @transform_5(%arg0: i32) -> (i32, i32) {
    %c0_i32 = arith.constant 0 : i32
    %c0_i32_0 = arith.constant 0 : i32
    return %arg0, %c0_i32 : i32, i32
  }
}

</mosaic_0001>

<llo_original>
// kernel: tpu_custom_call.1
$region0: #{tpu_custom_call.1}
  #allocation0 [shape = 'u32[]', space=smem, size = 0x4, offset = 0x4, fixed_abs, tag = 'smem constant byte address 0x4 - core index']
  #allocation1 [shape = 'u32[72,128]{1,0:T(1,128)}', space=vmem, size = 0x9000, scoped, tag = 'internal scratch']
  %s0 = inlined_call_operand.vmem [shape: f32[16,128], index: 0, kind: input, shape index: {}]
  %s1 = inlined_call_operand.vmem [shape: f32[128,32], index: 1, kind: input, shape index: {}]
  %s2 = inlined_call_operand.vmem [shape: f32[1,32], index: 2, kind: input, shape index: {}]
  %s3 = inlined_call_operand.vmem [shape: f32[32,128], index: 3, kind: input, shape index: {}]
  %s4 = inlined_call_operand.vmem [shape: f32[1,128], index: 4, kind: input, shape index: {}]
  %s5 = inlined_call_operand.hbm [shape: f32[16,128], index: 5, kind: output, shape index: {}]
  %s6 = sld [smem:[#allocation0]]
  $region30: #{tpu_custom_call.1} parent=0
    _
  %s8 = ssub.s32 1, %s6
  %s9 = scalar_select 0, %s8, %s6
  $region1: #{tpu_custom_call.1} parent=0
    #allocation2 [shape = 'u8[8192]{0}', space=vmem, size = 0x2000, scoped, tag = 'output window, operand 0, single buffered']
    #allocation3 [shape = 's32[1]{0}', space=sflag, size = 0x4, scoped, tag = 'scoped memory for tpu_custom_call.1']
    %10 = vsyncpa [#allocation3], 0
    // Predicated region
    $region2: #{tpu_custom_call.1} parent=1 // pred_check
      _
    $region3: #{tpu_custom_call.1} parent=1 // pred_check_branch
      %12 = sbr.rel (0) target = $region5
    $region4: #{tpu_custom_call.1} parent=1 // pred_region
      _
    $region5: #{tpu_custom_call.1} parent=1 // pred_fallthru
      _
    // Predicated region
    $region6: #{tpu_custom_call.1} parent=1 // pred_check
      _
    $region7: #{tpu_custom_call.1} parent=1 // pred_check_branch
      %14 = sbr.rel (0) target = $region9
    $region8: #{tpu_custom_call.1} parent=1 // pred_region
      _
    $region9: #{tpu_custom_call.1} parent=1 // pred_fallthru
      _
    // Predicated region
    $region10: #{tpu_custom_call.1} parent=1 // pred_check
      _
    $region11: #{tpu_custom_call.1} parent=1 // pred_check_branch
      %16 = sbr.rel (0) target = $region13
    $region12: #{tpu_custom_call.1} parent=1 // pred_region
      _
    $region13: #{tpu_custom_call.1} parent=1 // pred_fallthru
      _
    // Predicated region
    $region14: #{tpu_custom_call.1} parent=1 // pred_check
      _
    $region15: #{tpu_custom_call.1} parent=1 // pred_check_branch
      %18 = sbr.rel (0) target = $region17
    $region16: #{tpu_custom_call.1} parent=1 // pred_region
      _
    $region17: #{tpu_custom_call.1} parent=1 // pred_fallthru
      _
    // Predicated region
    $region18: #{tpu_custom_call.1} parent=1 // pred_check
      _
    $region19: #{tpu_custom_call.1} parent=1 // pred_check_branch
      %20 = sbr.rel (0) target = $region21
    $region20: #{tpu_custom_call.1} parent=1 // pred_region
      _
    $region21: #{tpu_custom_call.1} parent=1 // pred_fallthru
      _
    %v21 = vld [vmem:[%s0] sm:$0xff]
    %v22 = vld [vmem:[%s0 + $0x8] sm:$0xff]
    %v23 = vld [vmem:[%s1] sm:$0xff]
    %v24 = vld [vmem:[%s1 + $0x8] sm:$0xff]
    %v25 = vld [vmem:[%s1 + $0x10] sm:$0xff]
    %v26 = vld [vmem:[%s1 + $0x18] sm:$0xff]
    %v27 = vld [vmem:[%s1 + $0x20] sm:$0xff]
    %v28 = vld [vmem:[%s1 + $0x28] sm:$0xff]
    %v29 = vld [vmem:[%s1 + $0x30] sm:$0xff]
    %v30 = vld [vmem:[%s1 + $0x38] sm:$0xff]
    %v31 = vld [vmem:[%s1 + $0x40] sm:$0xff]
    %v32 = vld [vmem:[%s1 + $0x48] sm:$0xff]
    %v33 = vld [vmem:[%s1 + $0x50] sm:$0xff]
    %v34 = vld [vmem:[%s1 + $0x58] sm:$0xff]
    %v35 = vld [vmem:[%s1 + $0x60] sm:$0xff]
    %v36 = vld [vmem:[%s1 + $0x68] sm:$0xff]
    %v37 = vld [vmem:[%s1 + $0x70] sm:$0xff]
    %v38 = vld [vmem:[%s1 + $0x78] sm:$0xff]
    %v39 = vld [vmem:[%s2] sm:$0x1]
    %v41 = vperm.slane %v39, 0
    %43 = vmatpush.msra.mxu0 %v38
    %44 = vmatpush.msra.mxu0 %v37
    %45 = vmatpush.msra.mxu0 %v36
    %46 = vmatpush.msra.mxu0 %v35
    %47 = vmatpush.msra.mxu0 %v34
    %48 = vmatpush.msra.mxu0 %v33
    %49 = vmatpush.msra.mxu0 %v32
    %50 = vmatpush.msra.mxu0 %v31
    %51 = vmatpush.msra.mxu0 %v30
    %52 = vmatpush.msra.mxu0 %v29
    %53 = vmatpush.msra.mxu0 %v28
    %54 = vmatpush.msra.mxu0 %v27
    %55 = vmatpush.msra.mxu0 %v26
    %56 = vmatpush.msra.mxu0 %v25
    %57 = vmatpush.msra.mxu0 %v24
    %58 = vmatpush.msra.mxu0 %v23
    %59 = vmatmul.f32.gmra.mxu0 %v21
    %v60 = vpop.f32.mrf.mxu0
    %v61 = vadd.f32 %v41, %v60
    %62 = vmatmul.f32.gmra.mxu0 %v22
    %v63 = vpop.f32.mrf.mxu0
    %v64 = vadd.f32 %v41, %v63
    %65 = vdwg.mxu0
    %v66 = vtanh.pop %v61
    %v67 = vtanh.pop %v64
    %v68 = vld [vmem:[%s3] sm:$0xff]
    %v69 = vld [vmem:[%s3 + $0x8] sm:$0xff]
    %v70 = vld [vmem:[%s3 + $0x10] sm:$0xff]
    %v71 = vld [vmem:[%s3 + $0x18] sm:$0xff]
    %v72 = vld [vmem:[%s4] sm:$0x1]
    %v74 = vperm.slane %v72, 0
    %vm76 = vcmask 261120
    %v78 = vsel %vm76, %v66, 0
    %v81 = vsel %vm76, %v67, 0
    %83 = vmatpush.msra.mxu0 0.0
    %84 = vmatpush.msra.mxu0 0.0
    %85 = vmatpush.msra.mxu0 0.0
    %86 = vmatpush.msra.mxu0 0.0
    %87 = vmatpush.msra.mxu0 0.0
    %88 = vmatpush.msra.mxu0 0.0
    %89 = vmatpush.msra.mxu0 0.0
    %90 = vmatpush.msra.mxu0 0.0
    %91 = vmatpush.msra.mxu0 0.0
    %92 = vmatpush.msra.mxu0 0.0
    %93 = vmatpush.msra.mxu0 0.0
    %94 = vmatpush.msra.mxu0 0.0
    %95 = vmatpush.msra.mxu0 %v71
    %96 = vmatpush.msra.mxu0 %v70
    %97 = vmatpush.msra.mxu0 %v69
    %98 = vmatpush.msra.mxu0 %v68
    %99 = vmatmul.f32.gmra.mxu0 %v78
    %v100 = vpop.f32.mrf.mxu0
    %v101 = vadd.f32 %v74, %v100
    %102 = vmatmul.f32.gmra.mxu0 %v81
    %v103 = vpop.f32.mrf.mxu0
    %v104 = vadd.f32 %v74, %v103
    %105 = vdwg.mxu0
    %106 = vst [vmem:[#allocation2] sm:$0xff] %v101
    %107 = vst [vmem:[#allocation2 + $0x8] sm:$0xff] %v104
    // Predicated region
    $region22: #{tpu_custom_call.1} parent=1 // pred_check
      _
    $region23: #{tpu_custom_call.1} parent=1 // pred_check_branch
      %109 = sbr.rel (0) target = $region25
    $region24: #{tpu_custom_call.1} parent=1 // pred_region
      %111 = vsyncadd [#allocation3], 0
      %s112 = sshll.u32 [#allocation2], 4
      %s113 = int_to_ptr.vmem [resolvable:$true] %s112
      %s114 = sshll.u32 %s5, 4
      %s115 = int_to_ptr.hbm [resolvable:$true] %s114
      %120 = dma.vmem_to_hbm [thread:$0]  %s113, 256, %s115, [#allocation3], 128, 128, 8
    $region25: #{tpu_custom_call.1} parent=1 // pred_fallthru
      _
    // Predicated region
    $region26: #{tpu_custom_call.1} parent=1 // pred_check
      _
    $region27: #{tpu_custom_call.1} parent=1 // pred_check_branch
      %122 = sbr.rel (0) target = $region29
    $region28: #{tpu_custom_call.1} parent=1 // pred_region
      %124 = dma.done [#allocation3], 256
    $region29: #{tpu_custom_call.1} parent=1 // pred_fallthru
      _
    %125 = vsyncpa [#allocation3], 1

</llo_original>
